<compile_context>
chip_gen: v5e
topology: v5e:2x2
jax: 0.10.0
libtpu: 0.0.40
codegen_flags: <defaults>
</compile_context>

<pallas_src>
import jax
import jax.numpy as jnp
import numpy as np
from jax.experimental import pallas as pl
from jax.experimental.pallas import tpu as pltpu

LANE = 128
MAX_BLOCK_ROWS = 2048      # 2048*128*4B = 1 MiB per input half per buffer


def _make_kernel(block_rows, acc_rows):
    """Kernel factory closing over static tile geometry."""

    def _reduce(x):
        # Partially reduce a (block_rows, LANE) tile to (acc_rows, LANE).
        if acc_rows == block_rows:
            return x
        # block_rows is a multiple of 8 here; this is a sublane-group reduce:
        # pure vreg adds, no cross-lane traffic.
        return jnp.sum(x.reshape(block_rows // 8, 8, LANE), axis=0)

    def kernel(pre_ref, gt_ref, focal_ref, pu_ref, gts_ref, tp_ref, sq_ref):
        r = pl.program_id(1)

        @pl.when(r == 0)
        def _init():
            focal_ref[...] = jnp.zeros_like(focal_ref)
            pu_ref[...] = jnp.zeros_like(pu_ref)
            gts_ref[...] = jnp.zeros_like(gts_ref)
            tp_ref[...] = jnp.zeros_like(tp_ref)
            sq_ref[...] = jnp.zeros_like(sq_ref)

        pa = pre_ref[0].astype(jnp.float32)     # (block_rows, LANE)
        pb = pre_ref[1].astype(jnp.float32)
        gt = gt_ref[...].astype(jnp.float32)

        # pre_union = sigmoid(pre_a + pre_b) * gt
        pu = jax.nn.sigmoid(pa + pb) * gt

        # BinaryFocalLoss (logits=False): clamped BCE, alpha=1, gamma=2.
        eps = jnp.float32(1e-7)
        pr = jnp.clip(pu, eps, 1.0 - eps)
        bce = -(gt * jnp.log(pr) + (1.0 - gt) * jnp.log(1.0 - pr))
        pt = jnp.exp(-bce)
        one_m_pt = 1.0 - pt
        focal = one_m_pt * one_m_pt * bce

        # Changeloss elementwise squared diff on the unchanged region.
        d = (pa - pb) * (1.0 - gt)

        focal_ref[...] += _reduce(focal)
        pu_ref[...] += _reduce(pu)
        gts_ref[...] += _reduce(gt)
        tp_ref[...] += _reduce(gt * pu)
        sq_ref[...] += _reduce(d * d)

    return kernel


def _pick_block_rows(rows):
    """Return (block_rows, padded_rows) such that block_rows tiles padded_rows
    evenly and satisfies the (8,128) block constraint (multiple of 8 or equal
    to the full dim)."""
    if rows <= MAX_BLOCK_ROWS:
        return rows, rows                       # one full-dim block
    for br in range(MAX_BLOCK_ROWS, 7, -1):
        if rows % br == 0 and br % 8 == 0:
            return br, rows
    br = 1024                                   # rare fallback: pad rows
    return br, ((rows + br - 1) // br) * br


def changeloss_levir(pre, gt):
    """pre: (N, 2C, H, W), gt: (N, C, H, W) — NCHW, matching the torch module."""
    N, C2, H, W = pre.shape
    C = C2 // 2
    assert gt.shape == (N, C, H, W)

    L = C * H * W                               # valid elements per (batch, half)
    rows_raw = -(-L // LANE)                    # ceil(L / 128)
    block_rows, rows = _pick_block_rows(rows_raw)
    Lp = rows * LANE

    pre3 = pre.reshape(N, 2, L)                 # free, contiguous reshape
    gt2 = gt.reshape(N, L)
    if Lp != L:
        # Rare fallback: zero padding. Padded elements contribute exactly 0 to
        # every sum except focal, where they add ~(1e-7)^3 each (negligible).
        pre3 = jnp.pad(pre3, ((0, 0), (0, 0), (0, Lp - L)))
        gt2 = jnp.pad(gt2, ((0, 0), (0, Lp - L)))
    pre4 = pre3.reshape(N, 2, rows, LANE)
    gt3 = gt2.reshape(N, rows, LANE)

    acc_rows = 8 if block_rows % 8 == 0 else block_rows
    n_r = rows // block_rows

    kernel = _make_kernel(block_rows, acc_rows)

    acc_shape = jax.ShapeDtypeStruct((N, acc_rows, LANE), jnp.float32)
    acc_spec = pl.BlockSpec((None, acc_rows, LANE), lambda n, r: (n, 0, 0))

    focal_p, pu_p, gts_p, tp_p, sq_p = pl.pallas_call(
        kernel,
        out_shape=(acc_shape,) * 5,
        grid_spec=pltpu.PrefetchScalarGridSpec(
            num_scalar_prefetch=0,
            grid=(N, n_r),
            in_specs=[
                # Both channel halves of `pre` in one tile: (2, block_rows, 128).
                pl.BlockSpec((None, 2, block_rows, LANE),
                             lambda n, r: (n, 0, r, 0)),
                pl.BlockSpec((None, block_rows, LANE),
                             lambda n, r: (n, r, 0)),
            ],
            out_specs=[acc_spec] * 5,
        ),
        compiler_params=pltpu.CompilerParams(
            dimension_semantics=("parallel", "arbitrary")),
    )(pre4, gt3)

    # ---- scalar finalization (plain-JAX glue) ----
    m = jnp.float32(N * C * H * W)
    focal_mean = jnp.sum(focal_p) / m
    mse = jnp.sum(sq_p) / m
    tp = jnp.sum(tp_p)
    fp = jnp.sum(pu_p) - tp
    fn = jnp.sum(gts_p) - tp
    eps_d = jnp.float32(10.0)                   # DiceLoss(eps=10.0), beta=1
    score = (2.0 * tp + eps_d) / (2.0 * tp + fn + fp + eps_d)
    dice = 1.0 - score

    # FocalDiceLoss = 2*focal + dice ;  Changeloss = 2*MSE
    return 2.0 * focal_mean + dice + 2.0 * mse


def _reference(pre, gt):
    """Pure-JAX reference of Changeloss_LEVIR.forward."""
    C = pre.shape[1] // 2
    pa, pb = pre[:, :C], pre[:, C:]
    pu = jax.nn.sigmoid(pa + pb) * gt
    eps = 1e-7
    pr = jnp.clip(pu, eps, 1.0 - eps)
    bce = -(gt * jnp.log(pr) + (1.0 - gt) * jnp.log(1.0 - pr))
    pt = jnp.exp(-bce)
    focal = jnp.mean((1.0 - pt) ** 2 * bce)
    tp = jnp.sum(gt * pu)
    fp = jnp.sum(pu) - tp
    fn = jnp.sum(gt) - tp
    dice = 1.0 - (2.0 * tp + 10.0) / (2.0 * tp + fn + fp + 10.0)
    mse = jnp.mean(((pa - pb) * (1.0 - gt)) ** 2)
    return 2.0 * focal + dice + 2.0 * mse


if __name__ == "__main__":
    key = jax.random.PRNGKey(0)
    k1, k2 = jax.random.split(key)
    N, C, H, W = 2, 2, 16, 16          # pre has 2C = 4 channels
    pre = jax.random.normal(k1, (N, 2 * C, H, W), dtype=jnp.float32)
    gt = jax.random.bernoulli(k2, 0.3, (N, C, H, W)).astype(jnp.float32)

    loss = changeloss_levir(pre, gt)
    loss = jax.block_until_ready(loss)

    ref = jax.block_until_ready(_reference(pre, gt))
    np.testing.assert_allclose(np.asarray(loss), np.asarray(ref),
                               rtol=1e-5, atol=1e-6)
    print("KERNEL_OK")
</pallas_src>

<mosaic_0001>
module attributes {stable_mosaic.version = 11 : i64} {
  func.func @kernel(%arg0: i32, %arg1: i32, %arg2: memref<1x2x4x128xf32, #tpu.memory_space<vmem>>, %arg3: memref<1x4x128xf32, #tpu.memory_space<vmem>>, %arg4: memref<1x4x128xf32, #tpu.memory_space<vmem>>, %arg5: memref<1x4x128xf32, #tpu.memory_space<vmem>>, %arg6: memref<1x4x128xf32, #tpu.memory_space<vmem>>, %arg7: memref<1x4x128xf32, #tpu.memory_space<vmem>>, %arg8: memref<1x4x128xf32, #tpu.memory_space<vmem>>) attributes {dimension_semantics = [#tpu.dimension_semantics<parallel>, #tpu.dimension_semantics<arbitrary>], iteration_bounds = array<i64: 2, 1>, scalar_prefetch = 0 : i64, scratch_operands = 0 : i64, tpu.core_type = #tpu.core_type<tc>, window_params = [{transform_indices = @transform_0, window_bounds = array<i64: 1, 2, 4, 128>}, {transform_indices = @transform_1, window_bounds = array<i64: 1, 4, 128>}, {transform_indices = @transform_2, window_bounds = array<i64: 1, 4, 128>}, {transform_indices = @transform_3, window_bounds = array<i64: 1, 4, 128>}, {transform_indices = @transform_4, window_bounds = array<i64: 1, 4, 128>}, {transform_indices = @transform_5, window_bounds = array<i64: 1, 4, 128>}, {transform_indices = @transform_6, window_bounds = array<i64: 1, 4, 128>}]} {
    %c0_i32 = arith.constant 0 : i32
    %0 = arith.cmpi eq, %arg1, %c0_i32 : i32
    %1 = arith.extui %0 : i1 to i32
    %c0_i32_0 = arith.constant 0 : i32
    %2 = arith.cmpi ne, %1, %c0_i32_0 : i32
    scf.if %2 {
      %cst_49 = arith.constant 0.000000e+00 : f32
      %75 = vector.broadcast %cst_49 : f32 to vector<4x128xf32>
      %c0_50 = arith.constant 0 : index
      %c0_51 = arith.constant 0 : index
      %c0_52 = arith.constant 0 : index
      %76 = vector.load %arg4[%c0_50, %c0_51, %c0_52] : memref<1x4x128xf32, #tpu.memory_space<vmem>>, vector<1x4x128xf32>
      %77 = vector.shape_cast %76 : vector<1x4x128xf32> to vector<4x128xf32>
      %78 = vector.shape_cast %75 : vector<4x128xf32> to vector<1x4x128xf32>
      tpu.vector_store %arg4[%c0_50, %c0_51, %c0_52], %78 {strides = array<i32>} : memref<1x4x128xf32, #tpu.memory_space<vmem>>, vector<1x4x128xf32>,
      %cst_53 = arith.constant 0.000000e+00 : f32
      %79 = vector.broadcast %cst_53 : f32 to vector<4x128xf32>
      %c0_54 = arith.constant 0 : index
      %c0_55 = arith.constant 0 : index
      %c0_56 = arith.constant 0 : index
      %80 = vector.load %arg5[%c0_54, %c0_55, %c0_56] : memref<1x4x128xf32, #tpu.memory_space<vmem>>, vector<1x4x128xf32>
      %81 = vector.shape_cast %80 : vector<1x4x128xf32> to vector<4x128xf32>
      %82 = vector.shape_cast %79 : vector<4x128xf32> to vector<1x4x128xf32>
      tpu.vector_store %arg5[%c0_54, %c0_55, %c0_56], %82 {strides = array<i32>} : memref<1x4x128xf32, #tpu.memory_space<vmem>>, vector<1x4x128xf32>,
      %cst_57 = arith.constant 0.000000e+00 : f32
      %83 = vector.broadcast %cst_57 : f32 to vector<4x128xf32>
      %c0_58 = arith.constant 0 : index
      %c0_59 = arith.constant 0 : index
      %c0_60 = arith.constant 0 : index
      %84 = vector.load %arg6[%c0_58, %c0_59, %c0_60] : memref<1x4x128xf32, #tpu.memory_space<vmem>>, vector<1x4x128xf32>
      %85 = vector.shape_cast %84 : vector<1x4x128xf32> to vector<4x128xf32>
      %86 = vector.shape_cast %83 : vector<4x128xf32> to vector<1x4x128xf32>
      tpu.vector_store %arg6[%c0_58, %c0_59, %c0_60], %86 {strides = array<i32>} : memref<1x4x128xf32, #tpu.memory_space<vmem>>, vector<1x4x128xf32>,
      %cst_61 = arith.constant 0.000000e+00 : f32
      %87 = vector.broadcast %cst_61 : f32 to vector<4x128xf32>
      %c0_62 = arith.constant 0 : index
      %c0_63 = arith.constant 0 : index
      %c0_64 = arith.constant 0 : index
      %88 = vector.load %arg7[%c0_62, %c0_63, %c0_64] : memref<1x4x128xf32, #tpu.memory_space<vmem>>, vector<1x4x128xf32>
      %89 = vector.shape_cast %88 : vector<1x4x128xf32> to vector<4x128xf32>
      %90 = vector.shape_cast %87 : vector<4x128xf32> to vector<1x4x128xf32>
      tpu.vector_store %arg7[%c0_62, %c0_63, %c0_64], %90 {strides = array<i32>} : memref<1x4x128xf32, #tpu.memory_space<vmem>>, vector<1x4x128xf32>,
      %cst_65 = arith.constant 0.000000e+00 : f32
      %91 = vector.broadcast %cst_65 : f32 to vector<4x128xf32>
      %c0_66 = arith.constant 0 : index
      %c0_67 = arith.constant 0 : index
      %c0_68 = arith.constant 0 : index
      %92 = vector.load %arg8[%c0_66, %c0_67, %c0_68] : memref<1x4x128xf32, #tpu.memory_space<vmem>>, vector<1x4x128xf32>
      %93 = vector.shape_cast %92 : vector<1x4x128xf32> to vector<4x128xf32>
      %94 = vector.shape_cast %91 : vector<4x128xf32> to vector<1x4x128xf32>
      tpu.vector_store %arg8[%c0_66, %c0_67, %c0_68], %94 {strides = array<i32>} : memref<1x4x128xf32, #tpu.memory_space<vmem>>, vector<1x4x128xf32>,
    } else {
    }
    %c0 = arith.constant 0 : index
    %c0_1 = arith.constant 0 : index
    %c0_2 = arith.constant 0 : index
    %c0_3 = arith.constant 0 : index
    %3 = vector.load %arg2[%c0, %c0_1, %c0_2, %c0_3] : memref<1x2x4x128xf32, #tpu.memory_space<vmem>>, vector<1x1x4x128xf32>
    %4 = vector.shape_cast %3 : vector<1x1x4x128xf32> to vector<4x128xf32>
    %c0_4 = arith.constant 0 : index
    %c1 = arith.constant 1 : index
    %c0_5 = arith.constant 0 : index
    %c0_6 = arith.constant 0 : index
    %5 = vector.load %arg2[%c0_4, %c1, %c0_5, %c0_6] : memref<1x2x4x128xf32, #tpu.memory_space<vmem>>, vector<1x1x4x128xf32>
    %6 = vector.shape_cast %5 : vector<1x1x4x128xf32> to vector<4x128xf32>
    %c0_7 = arith.constant 0 : index
    %c0_8 = arith.constant 0 : index
    %c0_9 = arith.constant 0 : index
    %7 = vector.load %arg3[%c0_7, %c0_8, %c0_9] : memref<1x4x128xf32, #tpu.memory_space<vmem>>, vector<1x4x128xf32>
    %8 = vector.shape_cast %7 : vector<1x4x128xf32> to vector<4x128xf32>
    %9 = arith.addf %4, %6 : vector<4x128xf32>
    %10 = arith.negf %9 : vector<4x128xf32>
    %11 = math.exp %10 : vector<4x128xf32>
    %cst = arith.constant 1.000000e+00 : f32
    %12 = vector.broadcast %cst : f32 to vector<4x128xf32>
    %13 = arith.addf %12, %11 : vector<4x128xf32>
    %14 = arith.divf %12, %13 : vector<4x128xf32>
    %15 = arith.mulf %14, %8 : vector<4x128xf32>
    %cst_10 = arith.constant 1.000000e+00 : f32
    %cst_11 = arith.constant 1.000000e-07 : f32
    %16 = arith.subf %cst_10, %cst_11 : f32
    %cst_12 = arith.constant 1.000000e-07 : f32
    %17 = vector.broadcast %cst_12 : f32 to vector<4x128xf32>
    %18 = arith.maximumf %17, %15 : vector<4x128xf32>
    %19 = vector.broadcast %16 : f32 to vector<4x128xf32>
    %20 = arith.minimumf %19, %18 : vector<4x128xf32>
    %21 = math.log %20 : vector<4x128xf32>
    %22 = arith.mulf %8, %21 : vector<4x128xf32>
    %cst_13 = arith.constant 1.000000e+00 : f32
    %23 = vector.broadcast %cst_13 : f32 to vector<4x128xf32>
    %24 = arith.subf %23, %8 : vector<4x128xf32>
    %cst_14 = arith.constant 1.000000e+00 : f32
    %25 = vector.broadcast %cst_14 : f32 to vector<4x128xf32>
    %26 = arith.subf %25, %20 : vector<4x128xf32>
    %27 = math.log %26 : vector<4x128xf32>
    %28 = arith.mulf %24, %27 : vector<4x128xf32>
    %29 = arith.addf %22, %28 : vector<4x128xf32>
    %cst_15 = arith.constant 0.000000e+00 : f32
    %30 = vector.broadcast %cst_15 : f32 to vector<4x128xf32>
    %31 = arith.subf %30, %29 : vector<4x128xf32>
    %cst_16 = arith.constant 0.000000e+00 : f32
    %32 = vector.broadcast %cst_16 : f32 to vector<4x128xf32>
    %33 = arith.subf %32, %31 : vector<4x128xf32>
    %34 = math.exp %33 : vector<4x128xf32>
    %cst_17 = arith.constant 1.000000e+00 : f32
    %35 = vector.broadcast %cst_17 : f32 to vector<4x128xf32>
    %36 = arith.subf %35, %34 : vector<4x128xf32>
    %37 = arith.mulf %36, %36 : vector<4x128xf32>
    %38 = arith.mulf %37, %31 : vector<4x128xf32>
    %39 = arith.subf %4, %6 : vector<4x128xf32>
    %cst_18 = arith.constant 1.000000e+00 : f32
    %40 = vector.broadcast %cst_18 : f32 to vector<4x128xf32>
    %41 = arith.subf %40, %8 : vector<4x128xf32>
    %42 = arith.mulf %39, %41 : vector<4x128xf32>
    %c0_19 = arith.constant 0 : index
    %c0_20 = arith.constant 0 : index
    %c0_21 = arith.constant 0 : index
    %43 = vector.load %arg4[%c0_19, %c0_20, %c0_21] : memref<1x4x128xf32, #tpu.memory_space<vmem>>, vector<1x4x128xf32>
    %44 = vector.shape_cast %43 : vector<1x4x128xf32> to vector<4x128xf32>
    %45 = arith.addf %44, %38 : vector<4x128xf32>
    %c0_22 = arith.constant 0 : index
    %c0_23 = arith.constant 0 : index
    %c0_24 = arith.constant 0 : index
    %46 = vector.load %arg4[%c0_22, %c0_23, %c0_24] : memref<1x4x128xf32, #tpu.memory_space<vmem>>, vector<1x4x128xf32>
    %47 = vector.shape_cast %46 : vector<1x4x128xf32> to vector<4x128xf32>
    %48 = vector.shape_cast %45 : vector<4x128xf32> to vector<1x4x128xf32>
    tpu.vector_store %arg4[%c0_22, %c0_23, %c0_24], %48 {strides = array<i32>} : memref<1x4x128xf32, #tpu.memory_space<vmem>>, vector<1x4x128xf32>,
    %c0_25 = arith.constant 0 : index
    %c0_26 = arith.constant 0 : index
    %c0_27 = arith.constant 0 : index
    %49 = vector.load %arg5[%c0_25, %c0_26, %c0_27] : memref<1x4x128xf32, #tpu.memory_space<vmem>>, vector<1x4x128xf32>
    %50 = vector.shape_cast %49 : vector<1x4x128xf32> to vector<4x128xf32>
    %51 = arith.addf %50, %15 : vector<4x128xf32>
    %c0_28 = arith.constant 0 : index
    %c0_29 = arith.constant 0 : index
    %c0_30 = arith.constant 0 : index
    %52 = vector.load %arg5[%c0_28, %c0_29, %c0_30] : memref<1x4x128xf32, #tpu.memory_space<vmem>>, vector<1x4x128xf32>
    %53 = vector.shape_cast %52 : vector<1x4x128xf32> to vector<4x128xf32>
    %54 = vector.shape_cast %51 : vector<4x128xf32> to vector<1x4x128xf32>
    tpu.vector_store %arg5[%c0_28, %c0_29, %c0_30], %54 {strides = array<i32>} : memref<1x4x128xf32, #tpu.memory_space<vmem>>, vector<1x4x128xf32>,
    %c0_31 = arith.constant 0 : index
    %c0_32 = arith.constant 0 : index
    %c0_33 = arith.constant 0 : index
    %55 = vector.load %arg6[%c0_31, %c0_32, %c0_33] : memref<1x4x128xf32, #tpu.memory_space<vmem>>, vector<1x4x128xf32>
    %56 = vector.shape_cast %55 : vector<1x4x128xf32> to vector<4x128xf32>
    %57 = arith.addf %56, %8 : vector<4x128xf32>
    %c0_34 = arith.constant 0 : index
    %c0_35 = arith.constant 0 : index
    %c0_36 = arith.constant 0 : index
    %58 = vector.load %arg6[%c0_34, %c0_35, %c0_36] : memref<1x4x128xf32, #tpu.memory_space<vmem>>, vector<1x4x128xf32>
    %59 = vector.shape_cast %58 : vector<1x4x128xf32> to vector<4x128xf32>
    %60 = vector.shape_cast %57 : vector<4x128xf32> to vector<1x4x128xf32>
    tpu.vector_store %arg6[%c0_34, %c0_35, %c0_36], %60 {strides = array<i32>} : memref<1x4x128xf32, #tpu.memory_space<vmem>>, vector<1x4x128xf32>,
    %c0_37 = arith.constant 0 : index
    %c0_38 = arith.constant 0 : index
    %c0_39 = arith.constant 0 : index
    %61 = vector.load %arg7[%c0_37, %c0_38, %c0_39] : memref<1x4x128xf32, #tpu.memory_space<vmem>>, vector<1x4x128xf32>
    %62 = vector.shape_cast %61 : vector<1x4x128xf32> to vector<4x128xf32>
    %63 = arith.mulf %8, %15 : vector<4x128xf32>
    %64 = arith.addf %62, %63 : vector<4x128xf32>
    %c0_40 = arith.constant 0 : index
    %c0_41 = arith.constant 0 : index
    %c0_42 = arith.constant 0 : index
    %65 = vector.load %arg7[%c0_40, %c0_41, %c0_42] : memref<1x4x128xf32, #tpu.memory_space<vmem>>, vector<1x4x128xf32>
    %66 = vector.shape_cast %65 : vector<1x4x128xf32> to vector<4x128xf32>
    %67 = vector.shape_cast %64 : vector<4x128xf32> to vector<1x4x128xf32>
    tpu.vector_store %arg7[%c0_40, %c0_41, %c0_42], %67 {strides = array<i32>} : memref<1x4x128xf32, #tpu.memory_space<vmem>>, vector<1x4x128xf32>,
    %c0_43 = arith.constant 0 : index
    %c0_44 = arith.constant 0 : index
    %c0_45 = arith.constant 0 : index
    %68 = vector.load %arg8[%c0_43, %c0_44, %c0_45] : memref<1x4x128xf32, #tpu.memory_space<vmem>>, vector<1x4x128xf32>
    %69 = vector.shape_cast %68 : vector<1x4x128xf32> to vector<4x128xf32>
    %70 = arith.mulf %42, %42 : vector<4x128xf32>
    %71 = arith.addf %69, %70 : vector<4x128xf32>
    %c0_46 = arith.constant 0 : index
    %c0_47 = arith.constant 0 : index
    %c0_48 = arith.constant 0 : index
    %72 = vector.load %arg8[%c0_46, %c0_47, %c0_48] : memref<1x4x128xf32, #tpu.memory_space<vmem>>, vector<1x4x128xf32>
    %73 = vector.shape_cast %72 : vector<1x4x128xf32> to vector<4x128xf32>
    %74 = vector.shape_cast %71 : vector<4x128xf32> to vector<1x4x128xf32>
    tpu.vector_store %arg8[%c0_46, %c0_47, %c0_48], %74 {strides = array<i32>} : memref<1x4x128xf32, #tpu.memory_space<vmem>>, vector<1x4x128xf32>,
    return
  }
  func.func @transform_0(%arg0: i32, %arg1: i32) -> (i32, i32, i32, i32) {
    %c0_i32 = arith.constant 0 : i32
    %c0_i32_0 = arith.constant 0 : i32
    %c0_i32_1 = arith.constant 0 : i32
    return %arg0, %c0_i32, %arg1, %c0_i32_0 : i32, i32, i32, i32
  }
  func.func @transform_1(%arg0: i32, %arg1: i32) -> (i32, i32, i32) {
    %c0_i32 = arith.constant 0 : i32
    %c0_i32_0 = arith.constant 0 : i32
    return %arg0, %arg1, %c0_i32 : i32, i32, i32
  }
  func.func @transform_2(%arg0: i32, %arg1: i32) -> (i32, i32, i32) {
    %c0_i32 = arith.constant 0 : i32
    %c0_i32_0 = arith.constant 0 : i32
    %c0_i32_1 = arith.constant 0 : i32
    return %arg0, %c0_i32, %c0_i32_0 : i32, i32, i32
  }
  func.func @transform_3(%arg0: i32, %arg1: i32) -> (i32, i32, i32) {
    %c0_i32 = arith.constant 0 : i32
    %c0_i32_0 = arith.constant 0 : i32
    %c0_i32_1 = arith.constant 0 : i32
    return %arg0, %c0_i32, %c0_i32_0 : i32, i32, i32
  }
  func.func @transform_4(%arg0: i32, %arg1: i32) -> (i32, i32, i32) {
    %c0_i32 = arith.constant 0 : i32
    %c0_i32_0 = arith.constant 0 : i32
    %c0_i32_1 = arith.constant 0 : i32
    return %arg0, %c0_i32, %c0_i32_0 : i32, i32, i32
  }
  func.func @transform_5(%arg0: i32, %arg1: i32) -> (i32, i32, i32) {
    %c0_i32 = arith.constant 0 : i32
    %c0_i32_0 = arith.constant 0 : i32
    %c0_i32_1 = arith.constant 0 : i32
    return %arg0, %c0_i32, %c0_i32_0 : i32, i32, i32
  }
  func.func @transform_6(%arg0: i32, %arg1: i32) -> (i32, i32, i32) {
    %c0_i32 = arith.constant 0 : i32
    %c0_i32_0 = arith.constant 0 : i32
    %c0_i32_1 = arith.constant 0 : i32
    return %arg0, %c0_i32, %c0_i32_0 : i32, i32, i32
  }
}

</mosaic_0001>

<llo_original>
// kernel: tpu_custom_call.1
$region0: #{tpu_custom_call.1}
  #allocation0 [shape = 'u32[]', space=smem, size = 0x4, offset = 0x4, fixed_abs, tag = 'smem constant byte address 0x4 - core index']
  #allocation1 [shape = 'u32[72,128]{1,0:T(1,128)}', space=vmem, size = 0x9000, scoped, tag = 'internal scratch']
  %s0 = inlined_call_operand.hbm [shape: f32[2,2,4,128], index: 0, kind: input, shape index: {}]
  %s1 = inlined_call_operand.hbm [shape: f32[2,4,128], index: 1, kind: input, shape index: {}]
  %s2 = inlined_call_operand.hbm [shape: f32[2,4,128], index: 2, kind: output, shape index: {0}]
  %s3 = inlined_call_operand.hbm [shape: f32[2,4,128], index: 3, kind: output, shape index: {1}]
  %s4 = inlined_call_operand.hbm [shape: f32[2,4,128], index: 4, kind: output, shape index: {2}]
  %s5 = inlined_call_operand.hbm [shape: f32[2,4,128], index: 5, kind: output, shape index: {3}]
  %s6 = inlined_call_operand.hbm [shape: f32[2,4,128], index: 6, kind: output, shape index: {4}]
  %7 = xla_tuple %s2, %s3, %s4, %s5, %s6
  %s8 = sld [smem:[#allocation0]]
  $region85: #{tpu_custom_call.1} parent=0
    _
  %s10 = ssub.s32 1, %s8
  %s11 = scalar_select 0, %s10, %s8
  $region1: #{tpu_custom_call.1} parent=0
    #allocation2 [shape = 'u8[8192]{0}', space=vmem, size = 0x2000, scoped, tag = 'input window, operand 0']
    #allocation3 [shape = 's32[2]{0}', space=sflag, size = 0x8, scoped, tag = 'scoped memory for tpu_custom_call.1']
    #allocation4 [shape = 's32[2]{0}', space=sflag, size = 0x8, scoped, tag = 'scoped memory for tpu_custom_call.1']
    #allocation5 [shape = 'u8[4096]{0}', space=vmem, size = 0x1000, scoped, tag = 'input window, operand 1']
    #allocation6 [shape = 's32[2]{0}', space=sflag, size = 0x8, scoped, tag = 'scoped memory for tpu_custom_call.1']
    #allocation7 [shape = 'u8[4096]{0}', space=vmem, size = 0x1000, scoped, tag = 'output window, operand 0']
    #allocation8 [shape = 'u8[4096]{0}', space=vmem, size = 0x1000, scoped, tag = 'output window, operand 1']
    #allocation9 [shape = 's32[2]{0}', space=sflag, size = 0x8, scoped, tag = 'scoped memory for tpu_custom_call.1']
    #allocation10 [shape = 'u8[4096]{0}', space=vmem, size = 0x1000, scoped, tag = 'output window, operand 2']
    #allocation11 [shape = 'u8[4096]{0}', space=vmem, size = 0x1000, scoped, tag = 'output window, operand 3']
    #allocation12 [shape = 's32[2]{0}', space=sflag, size = 0x8, scoped, tag = 'scoped memory for tpu_custom_call.1']
    #allocation13 [shape = 'u8[4096]{0}', space=vmem, size = 0x1000, scoped, tag = 'output window, operand 4']
    %12 = vsyncpa [#allocation3], 0
    %s13 = scalar_lea.sflag [#allocation3], 1
    %14 = vsyncpa %s13, 0
    %15 = vsyncpa [#allocation6], 0
    %s16 = scalar_lea.sflag [#allocation6], 1
    %17 = vsyncpa %s16, 0
    %18 = vsyncpa [#allocation4], 0
    %s19 = scalar_lea.sflag [#allocation4], 1
    %20 = vsyncpa %s19, 0
    %21 = vsyncpa [#allocation9], 0
    %s22 = scalar_lea.sflag [#allocation9], 1
    %23 = vsyncpa %s22, 0
    %24 = vsyncpa [#allocation12], 0
    %s25 = scalar_lea.sflag [#allocation12], 1
    %26 = vsyncpa %s25, 0
    loop: start=0, step=1, limit=4
    $region2: #{tpu_custom_call.1} parent=1 // loop_pre_header
      _
    $region3: #{tpu_custom_call.1} parent=1 // loop_header
      %s28 = sphi 0, %s32
      %p29 = scmp.ge.s32.totalorder %s28, 4
      %s35 = sphi 0, %s47
      %s36 = sphi 0, %s43
      %s37 = sphi 0, %s35
      %s38 = sphi 0, %s36
      %s39 = sphi 0, %s37
      %s40 = sphi 0, %s38
      %s52 = sphi 0, %s54
      %s55 = sphi 0, %s52
      %s56 = sphi 0, %s55
      %s72 = sphi 0, %s56
      %s80 = sphi 0, %s82
      %s83 = sphi 0, %s80
      %s84 = sphi 0, %s83
      %s100 = sphi 0, %s84
      %s106 = sphi 0, %s108
      %s109 = sphi 0, %s106
      %s110 = sphi 0, %s109
      %s126 = sphi 0, %s110
      %s132 = sphi 0, %s134
      %s135 = sphi 0, %s132
      %s136 = sphi 0, %s135
      %s152 = sphi 0, %s136
      %s158 = sphi 0, %s160
      %s161 = sphi 0, %s158
      %s162 = sphi 0, %s161
      %s178 = sphi 0, %s162
      %s184 = sphi 0, %s186
      %s187 = sphi 0, %s184
      %s188 = sphi 0, %s187
      %s204 = sphi 0, %s188
      %s210 = sphi 0, %s212
      %s213 = sphi 0, %s210
      %s214 = sphi 0, %s213
      %s230 = sphi 0, %s214
    $region4: #{tpu_custom_call.1} parent=1 // loop_header_branch
      %31 = sbr.rel (%p29) target = $region8
    $region5: #{tpu_custom_call.1} parent=1 // loop_body
      %s33 = ssub.s32 %s28, 1
      %s34 = ssub.s32 %s28, 2
      %s41 = sadd.s32 1, %s36
      %p42 = scmp.ge.s32.totalorder %s41, 1
      %s43 = scalar_select %p42, 0, %s41
      %s44 = sadd.s32 1, %s35
      %s45 = scalar_select %p42, %s44, %s35
      %p46 = scmp.ge.s32.totalorder %s45, 2
      %s47 = scalar_select %p46, 0, %s45
      %s48 = ssub.s32 %s35, %s47
      %s49 = ssub.s32 %s36, %s43
      %s50 = sor.u32 %s48, %s49
      %p51 = scmp.eq.s32.totalorder %s50, 0
      %s53 = sadd.s32 %s52, 1
      %s54 = scalar_select %p51, %s52, %s53
      %p57 = pneg %p51
      %p58 = scmp.eq.s32.totalorder %s28, 1
      %p59 = por %p57, %p58
      %p60 = scmp.ne.s32.totalorder %s52, %s55
      %p61 = scmp.eq.s32.totalorder %s28, 0
      %p62 = por %p60, %p61
      %p63 = scmp.ne.s32.totalorder %s52, %s55
      %p64 = scmp.eq.s32.totalorder %s33, 1
      %p65 = por %p63, %p64
      %p66 = scmp.ne.s32.totalorder %s55, %s56
      %p67 = scmp.eq.s32.totalorder %s33, 0
      %p68 = por %p66, %p67
      %p69 = scmp.ne.s32.totalorder %s55, %s56
      %p70 = scmp.eq.s32.totalorder %s34, 1
      %p71 = por %p69, %p70
      %p73 = scmp.ne.s32.totalorder %s56, %s72
      %p74 = scmp.eq.s32.totalorder %s34, 0
      %p75 = por %p73, %p74
      %s76 = ssub.s32 %s35, %s47
      %s77 = ssub.s32 %s36, %s43
      %s78 = sor.u32 %s76, %s77
      %p79 = scmp.eq.s32.totalorder %s78, 0
      %s81 = sadd.s32 %s80, 1
      %s82 = scalar_select %p79, %s80, %s81
      %p85 = pneg %p79
      %p86 = scmp.eq.s32.totalorder %s28, 1
      %p87 = por %p85, %p86
      %p88 = scmp.ne.s32.totalorder %s80, %s83
      %p89 = scmp.eq.s32.totalorder %s28, 0
      %p90 = por %p88, %p89
      %p91 = scmp.ne.s32.totalorder %s80, %s83
      %p92 = scmp.eq.s32.totalorder %s33, 1
      %p93 = por %p91, %p92
      %p94 = scmp.ne.s32.totalorder %s83, %s84
      %p95 = scmp.eq.s32.totalorder %s33, 0
      %p96 = por %p94, %p95
      %p97 = scmp.ne.s32.totalorder %s83, %s84
      %p98 = scmp.eq.s32.totalorder %s34, 1
      %p99 = por %p97, %p98
      %p101 = scmp.ne.s32.totalorder %s84, %s100
      %p102 = scmp.eq.s32.totalorder %s34, 0
      %p103 = por %p101, %p102
      %s104 = ssub.s32 %s35, %s47
      %p105 = scmp.eq.s32.totalorder %s104, 0
      %s107 = sadd.s32 %s106, 1
      %s108 = scalar_select %p105, %s106, %s107
      %p111 = pneg %p105
      %p112 = scmp.eq.s32.totalorder %s28, 1
      %p113 = por %p111, %p112
      %p114 = scmp.ne.s32.totalorder %s106, %s109
      %p115 = scmp.eq.s32.totalorder %s28, 0
      %p116 = por %p114, %p115
      %p117 = scmp.ne.s32.totalorder %s106, %s109
      %p118 = scmp.eq.s32.totalorder %s33, 1
      %p119 = por %p117, %p118
      %p120 = scmp.ne.s32.totalorder %s109, %s110
      %p121 = scmp.eq.s32.totalorder %s33, 0
      %p122 = por %p120, %p121
      %p123 = scmp.ne.s32.totalorder %s109, %s110
      %p124 = scmp.eq.s32.totalorder %s34, 1
      %p125 = por %p123, %p124
      %p127 = scmp.ne.s32.totalorder %s110, %s126
      %p128 = scmp.eq.s32.totalorder %s34, 0
      %p129 = por %p127, %p128
      %s130 = ssub.s32 %s35, %s47
      %p131 = scmp.eq.s32.totalorder %s130, 0
      %s133 = sadd.s32 %s132, 1
      %s134 = scalar_select %p131, %s132, %s133
      %p137 = pneg %p131
      %p138 = scmp.eq.s32.totalorder %s28, 1
      %p139 = por %p137, %p138
      %p140 = scmp.ne.s32.totalorder %s132, %s135
      %p141 = scmp.eq.s32.totalorder %s28, 0
      %p142 = por %p140, %p141
      %p143 = scmp.ne.s32.totalorder %s132, %s135
      %p144 = scmp.eq.s32.totalorder %s33, 1
      %p145 = por %p143, %p144
      %p146 = scmp.ne.s32.totalorder %s135, %s136
      %p147 = scmp.eq.s32.totalorder %s33, 0
      %p148 = por %p146, %p147
      %p149 = scmp.ne.s32.totalorder %s135, %s136
      %p150 = scmp.eq.s32.totalorder %s34, 1
      %p151 = por %p149, %p150
      %p153 = scmp.ne.s32.totalorder %s136, %s152
      %p154 = scmp.eq.s32.totalorder %s34, 0
      %p155 = por %p153, %p154
      %s156 = ssub.s32 %s35, %s47
      %p157 = scmp.eq.s32.totalorder %s156, 0
      %s159 = sadd.s32 %s158, 1
      %s160 = scalar_select %p157, %s158, %s159
      %p163 = pneg %p157
      %p164 = scmp.eq.s32.totalorder %s28, 1
      %p165 = por %p163, %p164
      %p166 = scmp.ne.s32.totalorder %s158, %s161
      %p167 = scmp.eq.s32.totalorder %s28, 0
      %p168 = por %p166, %p167
      %p169 = scmp.ne.s32.totalorder %s158, %s161
      %p170 = scmp.eq.s32.totalorder %s33, 1
      %p171 = por %p169, %p170
      %p172 = scmp.ne.s32.totalorder %s161, %s162
      %p173 = scmp.eq.s32.totalorder %s33, 0
      %p174 = por %p172, %p173
      %p175 = scmp.ne.s32.totalorder %s161, %s162
      %p176 = scmp.eq.s32.totalorder %s34, 1
      %p177 = por %p175, %p176
      %p179 = scmp.ne.s32.totalorder %s162, %s178
      %p180 = scmp.eq.s32.totalorder %s34, 0
      %p181 = por %p179, %p180
      %s182 = ssub.s32 %s35, %s47
      %p183 = scmp.eq.s32.totalorder %s182, 0
      %s185 = sadd.s32 %s184, 1
      %s186 = scalar_select %p183, %s184, %s185
      %p189 = pneg %p183
      %p190 = scmp.eq.s32.totalorder %s28, 1
      %p191 = por %p189, %p190
      %p192 = scmp.ne.s32.totalorder %s184, %s187
      %p193 = scmp.eq.s32.totalorder %s28, 0
      %p194 = por %p192, %p193
      %p195 = scmp.ne.s32.totalorder %s184, %s187
      %p196 = scmp.eq.s32.totalorder %s33, 1
      %p197 = por %p195, %p196
      %p198 = scmp.ne.s32.totalorder %s187, %s188
      %p199 = scmp.eq.s32.totalorder %s33, 0
      %p200 = por %p198, %p199
      %p201 = scmp.ne.s32.totalorder %s187, %s188
      %p202 = scmp.eq.s32.totalorder %s34, 1
      %p203 = por %p201, %p202
      %p205 = scmp.ne.s32.totalorder %s188, %s204
      %p206 = scmp.eq.s32.totalorder %s34, 0
      %p207 = por %p205, %p206
      %s208 = ssub.s32 %s35, %s47
      %p209 = scmp.eq.s32.totalorder %s208, 0
      %s211 = sadd.s32 %s210, 1
      %s212 = scalar_select %p209, %s210, %s211
      %p215 = pneg %p209
      %p216 = scmp.eq.s32.totalorder %s28, 1
      %p217 = por %p215, %p216
      %p218 = scmp.ne.s32.totalorder %s210, %s213
      %p219 = scmp.eq.s32.totalorder %s28, 0
      %p220 = por %p218, %p219
      %p221 = scmp.ne.s32.totalorder %s210, %s213
      %p222 = scmp.eq.s32.totalorder %s33, 1
      %p223 = por %p221, %p222
      %p224 = scmp.ne.s32.totalorder %s213, %s214
      %p225 = scmp.eq.s32.totalorder %s33, 0
      %p226 = por %p224, %p225
      %p227 = scmp.ne.s32.totalorder %s213, %s214
      %p228 = scmp.eq.s32.totalorder %s34, 1
      %p229 = por %p227, %p228
      %p231 = scmp.ne.s32.totalorder %s214, %s230
      %p232 = scmp.eq.s32.totalorder %s34, 0
      %p233 = por %p231, %p232
      %p234 = scmp.le.s32.totalorder 1, %s28
      %p235 = scmp.lt.s32.totalorder %s28, 3
      %p236 = pnand %p234, %p235
      %p237 = pneg %p236
      // Predicated region
      $region9: #{tpu_custom_call.1} parent=5 // pred_check
        _
      $region10: #{tpu_custom_call.1} parent=5 // pred_check_branch
        %239 = sbr.rel (%p236) target = $region12
      $region11: #{tpu_custom_call.1} parent=5 // pred_region
        %s240 = ssub.s32 %s28, 1
      $region12: #{tpu_custom_call.1} parent=5 // pred_fallthru
        _
      %p241 = scmp.lt.s32.totalorder %s28, 2
      // Predicated region
      $region13: #{tpu_custom_call.1} parent=5 // pred_check
        %p242 = pneg %p241
      $region14: #{tpu_custom_call.1} parent=5 // pred_check_branch
        %244 = sbr.rel (%p242) target = $region16
      $region15: #{tpu_custom_call.1} parent=5 // pred_region
        // Predicated region
        $region17: #{tpu_custom_call.1} parent=15 // pred_check
          %p245 = pneg %p62
        $region18: #{tpu_custom_call.1} parent=15 // pred_check_branch
          %247 = sbr.rel (%p245) target = $region20
        $region19: #{tpu_custom_call.1} parent=15 // pred_region
          %s248 = sand.u32 %s52, 1
          %s249 = scalar_lea.sflag [#allocation3], %s248
          %s250 = sand.u32 %s52, 1
          %s251 = smul.addr %s250, 8
          %s252 = scalar_lea.vmem [#allocation2], %s251
          %254 = vsyncadd %s249, 0
          %s255 = smul.addr %s35, 2
          %s256 = sadd.s32 %s36, %s255
          %s257 = smul.addr %s256, 4
          %s258 = scalar_lea.hbm %s0, %s257
          %s259 = sshll.u32 %s258, 4
          %s260 = int_to_ptr.hbm [resolvable:$true] %s259
          %s261 = sshll.u32 %s252, 4
          %s262 = int_to_ptr.vmem [resolvable:$true] %s261
          %267 = dma.hbm_to_vmem [thread:$0]  %s260, 128, %s262, %s249, 64, 64, 4
        $region20: #{tpu_custom_call.1} parent=15 // pred_fallthru
          _
        // Predicated region
        $region21: #{tpu_custom_call.1} parent=15 // pred_check
          %p268 = pneg %p90
        $region22: #{tpu_custom_call.1} parent=15 // pred_check_branch
          %270 = sbr.rel (%p268) target = $region24
        $region23: #{tpu_custom_call.1} parent=15 // pred_region
          %s271 = sand.u32 %s80, 1
          %s272 = scalar_lea.sflag [#allocation6], %s271
          %s273 = sand.u32 %s80, 1
          %s274 = smul.addr %s273, 4
          %s275 = scalar_lea.vmem [#allocation5], %s274
          %277 = vsyncadd %s272, 0
          %s278 = sadd.s32 %s36, %s35
          %s279 = smul.addr %s278, 4
          %s280 = scalar_lea.hbm %s1, %s279
          %s282 = sshll.u32 %s280, 4
          %s283 = int_to_ptr.hbm [resolvable:$true] %s282
          %s284 = sshll.u32 %s275, 4
          %s285 = int_to_ptr.vmem [resolvable:$true] %s284
          %287 = dma.hbm_to_vmem [thread:$0]  %s283, 64, %s285, %s272
        $region24: #{tpu_custom_call.1} parent=15 // pred_fallthru
          _
      $region16: #{tpu_custom_call.1} parent=5 // pred_fallthru
        _
      %p288 = scmp.le.s32.totalorder 1, %s28
      %p289 = scmp.lt.s32.totalorder %s28, 3
      %p290 = pnand %p288, %p289
      %p291 = pneg %p290
      // Predicated region
      $region25: #{tpu_custom_call.1} parent=5 // pred_check
        _
      $region26: #{tpu_custom_call.1} parent=5 // pred_check_branch
        %293 = sbr.rel (%p290) target = $region28
      $region27: #{tpu_custom_call.1} parent=5 // pred_region
        %s294 = ssub.s32 %s28, 1
        %s295 = sand.u32 %s55, 1
        %s296 = scalar_lea.sflag [#allocation3], %s295
        %s297 = sand.u32 %s55, 1
        %s298 = smul.addr %s297, 8
        %s299 = scalar_lea.vmem [#allocation2], %s298
        // Predicated region
        $region29: #{tpu_custom_call.1} parent=27 // pred_check
          %p300 = pneg %p68
        $region30: #{tpu_custom_call.1} parent=27 // pred_check_branch
          %302 = sbr.rel (%p300) target = $region32
        $region31: #{tpu_custom_call.1} parent=27 // pred_region
          %304 = dma.done %s296, 128
        $region32: #{tpu_custom_call.1} parent=27 // pred_fallthru
          _
        %s305 = sand.u32 %s83, 1
        %s306 = scalar_lea.sflag [#allocation6], %s305
        %s307 = sand.u32 %s83, 1
        %s308 = smul.addr %s307, 4
        %s309 = scalar_lea.vmem [#allocation5], %s308
        // Predicated region
        $region33: #{tpu_custom_call.1} parent=27 // pred_check
          %p310 = pneg %p96
        $region34: #{tpu_custom_call.1} parent=27 // pred_check_branch
          %312 = sbr.rel (%p310) target = $region36
        $region35: #{tpu_custom_call.1} parent=27 // pred_region
          %314 = dma.done %s306, 64
        $region36: #{tpu_custom_call.1} parent=27 // pred_fallthru
          _
        %s315 = sand.u32 %s55, 1
        %s316 = scalar_lea.sflag [#allocation3], %s315
        %s317 = sand.u32 %s55, 1
        %s318 = smul.addr %s317, 8
        %s319 = scalar_lea.vmem [#allocation2], %s318
        %p320 = pneg %p68
        %p321 = pneg %p65
        %s322 = sand.u32 %s83, 1
        %s323 = scalar_lea.sflag [#allocation6], %s322
        %s324 = sand.u32 %s83, 1
        %s325 = smul.addr %s324, 4
        %s326 = scalar_lea.vmem [#allocation5], %s325
        %p327 = pneg %p96
        %p328 = pneg %p93
        %p329 = pneg %p122
        %p330 = pneg %p119
        %s331 = sand.u32 %s109, 1
        %s332 = scalar_lea.sflag [#allocation4], %s331
        %s333 = sand.u32 %s109, 1
        %s334 = smul.addr %s333, 4
        %s335 = scalar_lea.vmem [#allocation7], %s334
        %p336 = pneg %p148
        %p337 = pneg %p145
        %s338 = sand.u32 %s33, 1
        %s339 = scalar_lea.sflag [#allocation9], %s338
        %s340 = sand.u32 %s135, 1
        %s341 = smul.addr %s340, 4
        %s342 = scalar_lea.vmem [#allocation8], %s341
        %p343 = pneg %p174
        %p344 = pneg %p171
        %s345 = sand.u32 %s33, 1
        %s346 = scalar_lea.sflag [#allocation9], %s345
        %s347 = sand.u32 %s161, 1
        %s348 = smul.addr %s347, 4
        %s349 = scalar_lea.vmem [#allocation10], %s348
        %p350 = pneg %p200
        %p351 = pneg %p197
        %s352 = sand.u32 %s33, 1
        %s353 = scalar_lea.sflag [#allocation12], %s352
        %s354 = sand.u32 %s187, 1
        %s355 = smul.addr %s354, 4
        %s356 = scalar_lea.vmem [#allocation11], %s355
        %p357 = pneg %p226
        %p358 = pneg %p223
        %s359 = sand.u32 %s33, 1
        %s360 = scalar_lea.sflag [#allocation12], %s359
        %s361 = sand.u32 %s213, 1
        %s362 = smul.addr %s361, 4
        %s363 = scalar_lea.vmem [#allocation13], %s362
        %p364 = scmp.eq.s32.totalorder %s38, 0
        // Predicated region
        $region37: #{tpu_custom_call.1} parent=27 // pred_check
          %p365 = pneg %p364
        $region38: #{tpu_custom_call.1} parent=27 // pred_check_branch
          %367 = sbr.rel (%p365) target = $region40
        $region39: #{tpu_custom_call.1} parent=27 // pred_region
          %368 = vst [vmem:[%s335] sm:$0xf] 0.0
          %369 = vst [vmem:[%s342] sm:$0xf] 0.0
          %370 = vst [vmem:[%s349] sm:$0xf] 0.0
          %371 = vst [vmem:[%s356] sm:$0xf] 0.0
          %372 = vst [vmem:[%s363] sm:$0xf] 0.0
        $region40: #{tpu_custom_call.1} parent=27 // pred_fallthru
          _
        %v373 = vld [vmem:[%s299] sm:$0xf]
        %s374 = scalar_lea.vmem %s299, 4 [#allocation2]
        %v375 = vld [vmem:[%s374] sm:$0xf]
        %v376 = vld [vmem:[%s309] sm:$0xf]
        %v377 = vadd.f32 %v373, %v375
        %v378 = vxor.u32 %v377, 2147483648
        %v379 = vmul.f32 %v378, 1.442695
        %v380 = vpow.pop %v379
        %v381 = vadd.f32 %v380, 1.0
        %v382 = vrcp.pop %v381
        %v383 = vmul.f32 %v381, %v382
        %v384 = vsub.f32 1.0, %v383
        %v385 = vmul.f32 %v382, %v384
        %v386 = vadd.f32 %v382, %v385
        %vm387 = vweird.f32 %v381
        %vm388 = vweird.f32 %v382
        %vm389 = vmor %vm387, %vm388
        %v390 = vsel %vm389, %v382, %v386
        %v391 = vand.u32 2147483647, %v381
        %vm392 = vcmp.eq.f32.partialorder %v391, 8.507059e+37
        %v393 = vand.u32 %v381, 2147483648
        %v394 = vor.u32 1.1754944e-38, %v393
        %v395 = vsel %vm392, %v394, %v390
        %v396 = vmul.f32 1.0, %v395
        %v397 = vmul.f32 %v396, %v376
        %v398 = vmax.f32 %v397, 1e-07
        %v399 = vmin.f32 %v398, 0.9999999
        %v400 = vlog2.pop %v399
        %v401 = vmul.f32 %v400, 0.6931472
        %v402 = vmul.f32 %v376, %v401
        %v403 = vsub.f32 1.0, %v376
        %v404 = vsub.f32 1.0, %v399
        %v405 = vlog2.pop %v404
        %v406 = vmul.f32 %v405, 0.6931472
        %v407 = vmul.f32 %v403, %v406
        %v408 = vadd.f32 %v402, %v407
        %v409 = vsub.f32 0.0, %v408
        %v410 = vsub.f32 0.0, %v409
        %v411 = vmul.f32 %v410, 1.442695
        %v412 = vpow.pop %v411
        %v413 = vsub.f32 1.0, %v412
        %v414 = vmul.f32 %v413, %v413
        %v415 = vmul.f32 %v414, %v409
        %v416 = vsub.f32 %v373, %v375
        %v417 = vmul.f32 %v416, %v403
        %v418 = vld [vmem:[%s335] sm:$0xf]
        %v419 = vadd.f32 %v418, %v415
        %420 = vst [vmem:[%s335] sm:$0xf] %v419
        %v421 = vld [vmem:[%s342] sm:$0xf]
        %v422 = vadd.f32 %v421, %v397
        %423 = vst [vmem:[%s342] sm:$0xf] %v422
        %v424 = vld [vmem:[%s349] sm:$0xf]
        %v425 = vadd.f32 %v424, %v376
        %426 = vst [vmem:[%s349] sm:$0xf] %v425
        %v427 = vld [vmem:[%s356] sm:$0xf]
        %v428 = vmul.f32 %v376, %v397
        %v429 = vadd.f32 %v427, %v428
        %430 = vst [vmem:[%s356] sm:$0xf] %v429
        %v431 = vld [vmem:[%s363] sm:$0xf]
        %v432 = vmul.f32 %v417, %v417
        %v433 = vadd.f32 %v431, %v432
        %434 = vst [vmem:[%s363] sm:$0xf] %v433
        %s435 = sand.u32 %s109, 1
        %s436 = scalar_lea.sflag [#allocation4], %s435
        %s437 = sand.u32 %s109, 1
        %s438 = smul.addr %s437, 4
        %s439 = scalar_lea.vmem [#allocation7], %s438
        %s440 = sand.u32 %s33, 1
        %s441 = scalar_lea.sflag [#allocation9], %s440
        %s442 = sand.u32 %s135, 1
        %s443 = smul.addr %s442, 4
        %s444 = scalar_lea.vmem [#allocation8], %s443
        %s445 = sand.u32 %s33, 1
        %s446 = scalar_lea.sflag [#allocation9], %s445
        %s447 = sand.u32 %s161, 1
        %s448 = smul.addr %s447, 4
        %s449 = scalar_lea.vmem [#allocation10], %s448
        %s450 = sand.u32 %s33, 1
        %s451 = scalar_lea.sflag [#allocation12], %s450
        %s452 = sand.u32 %s187, 1
        %s453 = smul.addr %s452, 4
        %s454 = scalar_lea.vmem [#allocation11], %s453
        %s455 = sand.u32 %s33, 1
        %s456 = scalar_lea.sflag [#allocation12], %s455
        %s457 = sand.u32 %s213, 1
        %s458 = smul.addr %s457, 4
        %s459 = scalar_lea.vmem [#allocation13], %s458
        // Predicated region
        $region41: #{tpu_custom_call.1} parent=27 // pred_check
          %p460 = pneg %p119
        $region42: #{tpu_custom_call.1} parent=27 // pred_check_branch
          %462 = sbr.rel (%p460) target = $region44
        $region43: #{tpu_custom_call.1} parent=27 // pred_region
          %464 = vsyncadd %s436, 0
          %s465 = smul.addr %s37, 4
          %s466 = scalar_lea.hbm %s2, %s465
          %s468 = sshll.u32 %s439, 4
          %s469 = int_to_ptr.vmem [resolvable:$true] %s468
          %s470 = sshll.u32 %s466, 4
          %s471 = int_to_ptr.hbm [resolvable:$true] %s470
          %473 = dma.vmem_to_hbm [thread:$0]  %s469, 64, %s471, %s436
        $region44: #{tpu_custom_call.1} parent=27 // pred_fallthru
          _
        // Predicated region
        $region45: #{tpu_custom_call.1} parent=27 // pred_check
          %p474 = pneg %p145
        $region46: #{tpu_custom_call.1} parent=27 // pred_check_branch
          %476 = sbr.rel (%p474) target = $region48
        $region47: #{tpu_custom_call.1} parent=27 // pred_region
          %478 = vsyncadd %s441, 0
          %s479 = smul.addr %s37, 4
          %s480 = scalar_lea.hbm %s3, %s479
          %s482 = sshll.u32 %s444, 4
          %s483 = int_to_ptr.vmem [resolvable:$true] %s482
          %s484 = sshll.u32 %s480, 4
          %s485 = int_to_ptr.hbm [resolvable:$true] %s484
          %487 = dma.vmem_to_hbm [thread:$0]  %s483, 64, %s485, %s441
        $region48: #{tpu_custom_call.1} parent=27 // pred_fallthru
          _
        // Predicated region
        $region49: #{tpu_custom_call.1} parent=27 // pred_check
          %p488 = pneg %p171
        $region50: #{tpu_custom_call.1} parent=27 // pred_check_branch
          %490 = sbr.rel (%p488) target = $region52
        $region51: #{tpu_custom_call.1} parent=27 // pred_region
          %492 = vsyncadd %s446, 0
          %s493 = smul.addr %s37, 4
          %s494 = scalar_lea.hbm %s4, %s493
          %s496 = sshll.u32 %s449, 4
          %s497 = int_to_ptr.vmem [resolvable:$true] %s496
          %s498 = sshll.u32 %s494, 4
          %s499 = int_to_ptr.hbm [resolvable:$true] %s498
          %501 = dma.vmem_to_hbm [thread:$0]  %s497, 64, %s499, %s446
        $region52: #{tpu_custom_call.1} parent=27 // pred_fallthru
          _
        // Predicated region
        $region53: #{tpu_custom_call.1} parent=27 // pred_check
          %p502 = pneg %p197
        $region54: #{tpu_custom_call.1} parent=27 // pred_check_branch
          %504 = sbr.rel (%p502) target = $region56
        $region55: #{tpu_custom_call.1} parent=27 // pred_region
          %506 = vsyncadd %s451, 0
          %s507 = smul.addr %s37, 4
          %s508 = scalar_lea.hbm %s5, %s507
          %s510 = sshll.u32 %s454, 4
          %s511 = int_to_ptr.vmem [resolvable:$true] %s510
          %s512 = sshll.u32 %s508, 4
          %s513 = int_to_ptr.hbm [resolvable:$true] %s512
          %515 = dma.vmem_to_hbm [thread:$0]  %s511, 64, %s513, %s451
        $region56: #{tpu_custom_call.1} parent=27 // pred_fallthru
          _
        // Predicated region
        $region57: #{tpu_custom_call.1} parent=27 // pred_check
          %p516 = pneg %p223
        $region58: #{tpu_custom_call.1} parent=27 // pred_check_branch
          %518 = sbr.rel (%p516) target = $region60
        $region59: #{tpu_custom_call.1} parent=27 // pred_region
          %520 = vsyncadd %s456, 0
          %s521 = smul.addr %s37, 4
          %s522 = scalar_lea.hbm %s6, %s521
          %s524 = sshll.u32 %s459, 4
          %s525 = int_to_ptr.vmem [resolvable:$true] %s524
          %s526 = sshll.u32 %s522, 4
          %s527 = int_to_ptr.hbm [resolvable:$true] %s526
          %529 = dma.vmem_to_hbm [thread:$0]  %s525, 64, %s527, %s456
        $region60: #{tpu_custom_call.1} parent=27 // pred_fallthru
          _
      $region28: #{tpu_custom_call.1} parent=5 // pred_fallthru
        _
      %p530 = scmp.le.s32.totalorder 2, %s28
      // Predicated region
      $region61: #{tpu_custom_call.1} parent=5 // pred_check
        %p531 = pneg %p530
      $region62: #{tpu_custom_call.1} parent=5 // pred_check_branch
        %533 = sbr.rel (%p531) target = $region64
      $region63: #{tpu_custom_call.1} parent=5 // pred_region
        %s534 = ssub.s32 %s28, 2
        // Predicated region
        $region65: #{tpu_custom_call.1} parent=63 // pred_check
          %p535 = pneg %p125
        $region66: #{tpu_custom_call.1} parent=63 // pred_check_branch
          %537 = sbr.rel (%p535) target = $region68
        $region67: #{tpu_custom_call.1} parent=63 // pred_region
          %s538 = sand.u32 %s110, 1
          %s539 = scalar_lea.sflag [#allocation4], %s538
          %s540 = sand.u32 %s110, 1
          %s541 = smul.addr %s540, 4
          %s542 = scalar_lea.vmem [#allocation7], %s541
          %544 = dma.done %s539, 64
        $region68: #{tpu_custom_call.1} parent=63 // pred_fallthru
          _
        // Predicated region
        $region69: #{tpu_custom_call.1} parent=63 // pred_check
          %p545 = pneg %p151
        $region70: #{tpu_custom_call.1} parent=63 // pred_check_branch
          %547 = sbr.rel (%p545) target = $region72
        $region71: #{tpu_custom_call.1} parent=63 // pred_region
          %s548 = sand.u32 %s34, 1
          %s549 = scalar_lea.sflag [#allocation9], %s548
          %s550 = sand.u32 %s136, 1
          %s551 = smul.addr %s550, 4
          %s552 = scalar_lea.vmem [#allocation8], %s551
          %554 = dma.done %s549, 64
        $region72: #{tpu_custom_call.1} parent=63 // pred_fallthru
          _
        // Predicated region
        $region73: #{tpu_custom_call.1} parent=63 // pred_check
          %p555 = pneg %p177
        $region74: #{tpu_custom_call.1} parent=63 // pred_check_branch
          %557 = sbr.rel (%p555) target = $region76
        $region75: #{tpu_custom_call.1} parent=63 // pred_region
          %s558 = sand.u32 %s34, 1
          %s559 = scalar_lea.sflag [#allocation9], %s558
          %s560 = sand.u32 %s162, 1
          %s561 = smul.addr %s560, 4
          %s562 = scalar_lea.vmem [#allocation10], %s561
          %564 = dma.done %s559, 64
        $region76: #{tpu_custom_call.1} parent=63 // pred_fallthru
          _
        // Predicated region
        $region77: #{tpu_custom_call.1} parent=63 // pred_check
          %p565 = pneg %p203
        $region78: #{tpu_custom_call.1} parent=63 // pred_check_branch
          %567 = sbr.rel (%p565) target = $region80
        $region79: #{tpu_custom_call.1} parent=63 // pred_region
          %s568 = sand.u32 %s34, 1
          %s569 = scalar_lea.sflag [#allocation12], %s568
          %s570 = sand.u32 %s188, 1
          %s571 = smul.addr %s570, 4
          %s572 = scalar_lea.vmem [#allocation11], %s571
          %574 = dma.done %s569, 64
        $region80: #{tpu_custom_call.1} parent=63 // pred_fallthru
          _
        // Predicated region
        $region81: #{tpu_custom_call.1} parent=63 // pred_check
          %p575 = pneg %p229
        $region82: #{tpu_custom_call.1} parent=63 // pred_check_branch
          %577 = sbr.rel (%p575) target = $region84
        $region83: #{tpu_custom_call.1} parent=63 // pred_region
          %s578 = sand.u32 %s34, 1
          %s579 = scalar_lea.sflag [#allocation12], %s578
          %s580 = sand.u32 %s214, 1
          %s581 = smul.addr %s580, 4
          %s582 = scalar_lea.vmem [#allocation13], %s581
          %584 = dma.done %s579, 64
        $region84: #{tpu_custom_call.1} parent=63 // pred_fallthru
          _
      $region64: #{tpu_custom_call.1} parent=5 // pred_fallthru
        _
    $region6: #{tpu_custom_call.1} parent=1 // loop_footer
      %s32 = sadd.s32 1, %s28
    $region7: #{tpu_custom_call.1} parent=1 // loop_footer_branch
      %27 = sbr.rel target = $region3
    $region8: #{tpu_custom_call.1} parent=1 // loop_exit
      _
    %585 = vsyncpa [#allocation3], 1
    %s586 = scalar_lea.sflag [#allocation3], 1
    %587 = vsyncpa %s586, 1
    %588 = vsyncpa [#allocation6], 1
    %s589 = scalar_lea.sflag [#allocation6], 1
    %590 = vsyncpa %s589, 1
    %591 = vsyncpa [#allocation4], 1
    %s592 = scalar_lea.sflag [#allocation4], 1
    %593 = vsyncpa %s592, 1
    %594 = vsyncpa [#allocation9], 1
    %s595 = scalar_lea.sflag [#allocation9], 1
    %596 = vsyncpa %s595, 1
    %597 = vsyncpa [#allocation12], 1
    %s598 = scalar_lea.sflag [#allocation12], 1
    %599 = vsyncpa %s598, 1

</llo_original>
